<compile_context>
chip_gen: v7x
topology: tpu7x:2x2x1
jax: 0.10.0
libtpu: 0.0.40
codegen_flags: <defaults>
</compile_context>

<pallas_src>
import functools

import jax
import jax.numpy as jnp
from jax.experimental import pallas as pl
from jax.experimental.pallas import tpu as pltpu


# ----------------------------------------------------------------------------
# small helpers
# ----------------------------------------------------------------------------
def _row_tile(n, target):
    """n if n<=target, else the largest multiple-of-8 divisor of n <= target,
    else 0 (caller pads or falls back)."""
    if n <= target:
        return n
    for t in range(target, 7, -1):
        if n % t == 0 and t % 8 == 0:
            return t
    return 0


def _vmem_budget():
    """Physical VMEM of this generation minus 25% headroom for compiler scratch."""
    cap = 64 << 20
    try:
        info = pltpu.get_tpu_info()
        cap = int(getattr(info, "vmem_capacity_bytes", cap)) or cap
    except Exception:
        pass
    return (cap * 3) // 4      # 48 MiB on v7x, 96 MiB on v5e/v6e


def _compiler_params(dimension_semantics, block_bytes):
    # ~double-buffered working set + headroom, clamped to the generation budget.
    want = 2 * int(block_bytes) + (4 << 20)
    limit = int(min(max(want, 16 << 20), _vmem_budget()))
    return pltpu.CompilerParams(dimension_semantics=dimension_semantics,
                                vmem_limit_bytes=limit)


# ----------------------------------------------------------------------------
# Kernel 1: fused pairwise-distance + top-k neighbor selection
#   grid = (B, row_tiles); emits only (B, N, k) int32 indices.
# ----------------------------------------------------------------------------
def _knn_kernel(xr_ref, xa_ref, sq_ref, idx_ref, *, k):
    xr = xr_ref[...]                                    # (tr, C) native dtype
    xa = xa_ref[...]                                    # (N,  C) native dtype
    # bf16 (or f32 for the raw xyz layer) operands, f32 MXU accumulation.
    inner = jax.lax.dot_general(xr, xa, (((1,), (1,)), ((), ())),
                                preferred_element_type=jnp.float32)  # (tr, N)
    sq_r = jnp.sum(xr.astype(jnp.float32) ** 2, axis=-1, keepdims=True)
    d = 2.0 * inner - sq_r - sq_ref[...]                # (tr, N) neg sq dist

    tr, n = d.shape
    colf = jax.lax.broadcasted_iota(jnp.int32, (tr, n), 1).astype(jnp.float32)
    picks = []
    for _ in range(k):                                  # k sequential argmax passes
        m = jnp.max(d, axis=-1, keepdims=True)                       # (tr, 1)
        sel = jnp.where(d >= m, colf, jnp.float32(n))
        pick = jnp.min(sel, axis=-1, keepdims=True)                  # (tr, 1)
        picks.append(pick)
        d = jnp.where(colf == pick, -jnp.inf, d)
    idx_ref[...] = jnp.concatenate(picks, axis=-1).astype(jnp.int32)


def knn_indices(x_cl, k):
    """x_cl: (B, N, C) -> (B, N, k) int32 per-batch neighbor indices."""
    B, N, C = x_cl.shape
    # per-point squared norms computed ONCE (not per row tile).
    sq = jnp.sum(x_cl.astype(jnp.float32) ** 2, axis=-1).reshape(B, 1, N)
    tr = _row_tile(N, 512)
    if tr == 0:
        tr = N  # TODO(synk): pad+mask rows if N has no multiple-of-8 divisor.
    isz = x_cl.dtype.itemsize
    blk = tr * C * isz + N * C * isz + N * 4 + 2 * tr * N * 4 + tr * k * 4
    return pl.pallas_call(
        functools.partial(_knn_kernel, k=k),
        grid=(B, N // tr),
        in_specs=[pl.BlockSpec((None, tr, C), lambda b, r: (b, r, 0)),
                  pl.BlockSpec((None, N, C), lambda b, r: (b, 0, 0)),
                  pl.BlockSpec((None, 1, N), lambda b, r: (b, 0, 0))],
        out_specs=pl.BlockSpec((None, tr, k), lambda b, r: (b, r, 0)),
        out_shape=jax.ShapeDtypeStruct((B, N, k), jnp.int32),
        compiler_params=_compiler_params(("parallel", "parallel"), blk),
    )(x_cl, x_cl, sq)


# ----------------------------------------------------------------------------
# Glue: neighbor gather (k-major layout, bf16)
# ----------------------------------------------------------------------------
def get_graph_feature(x_cl, k):
    """x_cl: (B, N, C) -> (nbrs (k, B*N, C) bf16, centers (B*N, C) bf16)."""
    B, N, C = x_cl.shape
    idx = knn_indices(x_cl, k)                                    # Pallas kernel
    idx = idx + (jnp.arange(B, dtype=idx.dtype) * N)[:, None, None]
    idx_kmaj = jnp.transpose(idx, (2, 0, 1)).reshape(k, B * N)
    x_flat = x_cl.reshape(B * N, C).astype(jnp.bfloat16)
    # TODO(synk): data-dependent row gather stays in XLA (no robust in-kernel
    # DMA-gather expression); kept k-major so EdgeConv streams one slice per j.
    nbrs = jnp.take(x_flat, idx_kmaj, axis=0)                     # (k, M, C)
    return nbrs, x_flat


# ----------------------------------------------------------------------------
# Kernel 2: EdgeConv = split matmul + folded BN + LeakyReLU(0.2) + max over k
#   grid = (row_tiles, k); k is a sequential max-accumulator axis.
# ----------------------------------------------------------------------------
def _edgeconv_kernel(nbr_ref, cen_ref, wt_ref, wd_ref, s_ref, b_ref,
                     out_ref, cterm_ref, acc_ref):
    j = pl.program_id(1)

    @pl.when(j == 0)
    def _():
        # center term ctr @ (W_bot - W_top), shared by all k neighbors
        cterm_ref[...] = jnp.dot(cen_ref[...], wd_ref[...],
                                 preferred_element_type=jnp.float32)

    y = jnp.dot(nbr_ref[...], wt_ref[...],
                preferred_element_type=jnp.float32) + cterm_ref[...]
    y = y * s_ref[...] + b_ref[...]
    y = jnp.where(y > 0, y, 0.2 * y)

    @pl.when(j == 0)
    def _():
        acc_ref[...] = y                 # init with first neighbor (no -inf fill)

    @pl.when(j > 0)
    def _():
        acc_ref[...] = jnp.maximum(acc_ref[...], y)

    @pl.when(j == pl.num_programs(1) - 1)
    def _():
        out_ref[...] = acc_ref[...].astype(out_ref.dtype)


def edgeconv(nbrs, centers, w_top, w_diff, scale, bias):
    """nbrs: (k, M, C) bf16; centers: (M, C) bf16 -> (M, Cout) bf16."""
    k, M, C = nbrs.shape
    cout = w_top.shape[1]
    tm = _row_tile(M, 1024)
    if tm == 0:                                   # awkward M: pad rows instead
        tm = 1024
    m_pad = -(-M // tm) * tm
    if m_pad != M:                                # zero rows are harmless here
        nbrs = jnp.pad(nbrs, ((0, 0), (0, m_pad - M), (0, 0)))
        centers = jnp.pad(centers, ((0, m_pad - M), (0, 0)))
    blk = (2 * tm * C * 2            # nbr + center bf16 tiles
           + 2 * C * cout * 2        # W_top + W_diff
           + 2 * cout * 4            # scale + bias
           + tm * cout * 2           # bf16 output tile
           + 2 * tm * cout * 4       # f32 scratch (cterm + acc)
           + tm * cout * 4)          # f32 matmul intermediate
    out = pl.pallas_call(
        _edgeconv_kernel,
        grid=(m_pad // tm, k),
        in_specs=[pl.BlockSpec((None, tm, C), lambda i, j: (j, i, 0)),
                  pl.BlockSpec((tm, C), lambda i, j: (i, 0)),
                  pl.BlockSpec((C, cout), lambda i, j: (0, 0)),
                  pl.BlockSpec((C, cout), lambda i, j: (0, 0)),
                  pl.BlockSpec((1, cout), lambda i, j: (0, 0)),
                  pl.BlockSpec((1, cout), lambda i, j: (0, 0))],
        out_specs=pl.BlockSpec((tm, cout), lambda i, j: (i, 0)),
        out_shape=jax.ShapeDtypeStruct((m_pad, cout), jnp.bfloat16),
        scratch_shapes=[pltpu.VMEM((tm, cout), jnp.float32),
                        pltpu.VMEM((tm, cout), jnp.float32)],
        compiler_params=_compiler_params(("parallel", "arbitrary"), blk),
    )(nbrs, centers, w_top, w_diff, scale, bias)
    return out[:M] if m_pad != M else out


# ----------------------------------------------------------------------------
# Kernel 3: conv4 (512->1024, weight split in 4 row-blocks) + BN +
#           LeakyReLU(0.2) + max/avg pool over points.
#   grid = (B, point_tiles); running max/sum accumulators in VMEM scratch.
#   x0..x3 stay separate -> no (M,512) concat round trip through HBM.
# ----------------------------------------------------------------------------
def _conv4_pool_kernel(x0_ref, x1_ref, x2_ref, x3_ref,
                       w0_ref, w1_ref, w2_ref, w3_ref, s_ref, b_ref,
                       max_ref, avg_ref, mx_sc, sm_sc, *, inv_n):
    t = pl.program_id(1)

    y = jnp.dot(x0_ref[...], w0_ref[...], preferred_element_type=jnp.float32)
    y = y + jnp.dot(x1_ref[...], w1_ref[...], preferred_element_type=jnp.float32)
    y = y + jnp.dot(x2_ref[...], w2_ref[...], preferred_element_type=jnp.float32)
    y = y + jnp.dot(x3_ref[...], w3_ref[...], preferred_element_type=jnp.float32)
    y = y * s_ref[...] + b_ref[...]
    y = jnp.where(y > 0, y, 0.2 * y)                    # (tn, 1024)

    tile_max = jnp.max(y, axis=0, keepdims=True)
    tile_sum = jnp.sum(y, axis=0, keepdims=True)

    @pl.when(t == 0)
    def _():
        mx_sc[...] = tile_max
        sm_sc[...] = tile_sum

    @pl.when(t > 0)
    def _():
        mx_sc[...] = jnp.maximum(mx_sc[...], tile_max)
        sm_sc[...] = sm_sc[...] + tile_sum

    @pl.when(t == pl.num_programs(1) - 1)
    def _():
        max_ref[...] = mx_sc[...]
        avg_ref[...] = sm_sc[...] * inv_n


def conv4_pool(x0, x1, x2, x3, w0, w1, w2, w3, scale, bias):
    """x0..x3: (B, N, Ci) bf16 -> (max (B,1024) f32, avg (B,1024) f32)."""
    B, N, _ = x0.shape
    cout = w0.shape[1]
    tn = _row_tile(N, 512)
    if tn == 0:
        tn = N  # TODO(synk): pad+mask points if N has no multiple-of-8 divisor.
    c0, c1, c2, c3 = x0.shape[2], x1.shape[2], x2.shape[2], x3.shape[2]
    cins = c0 + c1 + c2 + c3
    blk = (tn * cins * 2            # activation tiles
           + cins * cout * 2        # four weight blocks
           + tn * cout * 4          # f32 matmul intermediate
           + 6 * cout * 4)          # scale/bias/out/scratch vectors
    # TODO(synk): for B == 1 on v7x, emit per-tile partial (max,sum) outputs
    # combined in the wrapper so both TensorCores get work.
    kern = functools.partial(_conv4_pool_kernel, inv_n=1.0 / N)
    xmax, xavg = pl.pallas_call(
        kern,
        grid=(B, N // tn),
        in_specs=[pl.BlockSpec((None, tn, c0), lambda b, t: (b, t, 0)),
                  pl.BlockSpec((None, tn, c1), lambda b, t: (b, t, 0)),
                  pl.BlockSpec((None, tn, c2), lambda b, t: (b, t, 0)),
                  pl.BlockSpec((None, tn, c3), lambda b, t: (b, t, 0)),
                  pl.BlockSpec((c0, cout), lambda b, t: (0, 0)),
                  pl.BlockSpec((c1, cout), lambda b, t: (0, 0)),
                  pl.BlockSpec((c2, cout), lambda b, t: (0, 0)),
                  pl.BlockSpec((c3, cout), lambda b, t: (0, 0)),
                  pl.BlockSpec((1, cout), lambda b, t: (0, 0)),
                  pl.BlockSpec((1, cout), lambda b, t: (0, 0))],
        out_specs=(pl.BlockSpec((None, 1, cout), lambda b, t: (b, 0, 0)),
                   pl.BlockSpec((None, 1, cout), lambda b, t: (b, 0, 0))),
        out_shape=(jax.ShapeDtypeStruct((B, 1, cout), jnp.float32),
                   jax.ShapeDtypeStruct((B, 1, cout), jnp.float32)),
        scratch_shapes=[pltpu.VMEM((1, cout), jnp.float32),
                        pltpu.VMEM((1, cout), jnp.float32)],
        compiler_params=_compiler_params(("parallel", "arbitrary"), blk),
    )(x0, x1, x2, x3, w0, w1, w2, w3, scale, bias)
    return xmax.reshape(B, cout), xavg.reshape(B, cout)


# ----------------------------------------------------------------------------
# Kernel 4: MLP head ln1..ln4 (LeakyReLU 0.01, no BN — matches the reference
#           forward); dropout = eval identity.  Weight-DMA bound -> bf16.
# ----------------------------------------------------------------------------
def _mlp_kernel(x_ref, w1_ref, w2_ref, w3_ref, w4_ref, out_ref):
    def lrelu(v):
        return jnp.where(v > 0, v, 0.01 * v)
    h = x_ref[...].astype(jnp.bfloat16)
    h = lrelu(jnp.dot(h, w1_ref[...], preferred_element_type=jnp.float32))
    h = lrelu(jnp.dot(h.astype(jnp.bfloat16), w2_ref[...],
                      preferred_element_type=jnp.float32))
    h = lrelu(jnp.dot(h.astype(jnp.bfloat16), w3_ref[...],
                      preferred_element_type=jnp.float32))
    out_ref[...] = jnp.dot(h.astype(jnp.bfloat16), w4_ref[...],
                           preferred_element_type=jnp.float32)


def mlp_head(x, w1, w2, w3, w4):
    batch = x.shape[0]
    cout = w4.shape[1]
    blk = sum(int(a.size) * a.dtype.itemsize for a in (x, w1, w2, w3, w4))
    return pl.pallas_call(
        _mlp_kernel,
        grid=(1,),
        in_specs=[pl.BlockSpec(x.shape, lambda i: (0, 0)),
                  pl.BlockSpec(w1.shape, lambda i: (0, 0)),
                  pl.BlockSpec(w2.shape, lambda i: (0, 0)),
                  pl.BlockSpec(w3.shape, lambda i: (0, 0)),
                  pl.BlockSpec(w4.shape, lambda i: (0, 0))],
        out_specs=pl.BlockSpec((batch, cout), lambda i: (0, 0)),
        out_shape=jax.ShapeDtypeStruct((batch, cout), jnp.float32),
        compiler_params=_compiler_params(("arbitrary",), blk),
    )(x, w1, w2, w3, w4)


# ----------------------------------------------------------------------------
# Parameters (deterministic, in-script); BN folded to (scale, bias) eval-mode.
# 64-wide EdgeConv outputs are zero-padded to 128 lanes; the corresponding
# downstream weight rows are zero-padded too, so the math is unchanged.
# ----------------------------------------------------------------------------
def conv_w(key, cin, cout):
    return (jax.random.normal(key, (cin, cout), jnp.float32)
            * (1.0 / jnp.sqrt(jnp.float32(cin))))


def make_bn(key, c, eps=1e-5):
    k1, k2, k3, k4 = jax.random.split(key, 4)
    gamma = 1.0 + 0.1 * jax.random.normal(k1, (c,), jnp.float32)
    beta = 0.1 * jax.random.normal(k2, (c,), jnp.float32)
    mean = 0.1 * jax.random.normal(k3, (c,), jnp.float32)
    var = 1.0 + 0.5 * jax.random.uniform(k4, (c,), jnp.float32)
    scale = gamma / jnp.sqrt(var + eps)
    bias = beta - mean * scale
    return scale.reshape(1, c), bias.reshape(1, c)


def make_edgeconv_params(kw, kb, c_in, c_out, c_in_pad=None, c_out_pad=None):
    c_in_pad = c_in if c_in_pad is None else c_in_pad
    c_out_pad = c_out if c_out_pad is None else c_out_pad
    w = conv_w(kw, 2 * c_in, c_out)                     # rows: [nbr-ctr ; ctr]
    w_top = w[:c_in]
    w_diff = w[c_in:] - w[:c_in]                        # W_bot - W_top
    scale, bias = make_bn(kb, c_out)

    def pad_w(m):
        out = jnp.zeros((c_in_pad, c_out_pad), jnp.float32)
        return out.at[:c_in, :c_out].set(m).astype(jnp.bfloat16)

    def pad_v(v, fill):
        out = jnp.full((1, c_out_pad), fill, jnp.float32)
        return out.at[:, :c_out].set(v)

    # padded output lanes stay exactly 0 (W cols = 0, scale = 1, bias = 0).
    return pad_w(w_top), pad_w(w_diff), pad_v(scale, 1.0), pad_v(bias, 0.0)


def make_conv4_params(kw, kb):
    w = conv_w(kw, 512, 1024)     # logical row blocks: x0(64) x1(64) x2(128) x3(256)
    w0 = jnp.zeros((128, 1024), jnp.float32).at[:64].set(w[0:64]).astype(jnp.bfloat16)
    w1 = jnp.zeros((128, 1024), jnp.float32).at[:64].set(w[64:128]).astype(jnp.bfloat16)
    w2 = w[128:256].astype(jnp.bfloat16)
    w3 = w[256:512].astype(jnp.bfloat16)
    scale, bias = make_bn(kb, 1024)
    return w0, w1, w2, w3, scale, bias


# ----------------------------------------------------------------------------
# Full forward pass
# ----------------------------------------------------------------------------
def dgcnn_forward(feat_xyz, params, k=5):
    # feat_xyz: (B, N, 3); PyTorch transposes to (B, 3, N) — we stay (B, N, C).
    B, N, _ = feat_xyz.shape
    x = feat_xyz.astype(jnp.float32)

    nbrs, ctr = get_graph_feature(x, k)
    x0 = edgeconv(nbrs, ctr, *params['conv0'])           # (M, 128) bf16, zero tail
    nbrs, ctr = get_graph_feature(x0.reshape(B, N, -1), k)
    x1 = edgeconv(nbrs, ctr, *params['conv1'])           # (M, 128), zero tail
    nbrs, ctr = get_graph_feature(x1.reshape(B, N, -1), k)
    x2 = edgeconv(nbrs, ctr, *params['conv2'])           # (M, 128)
    nbrs, ctr = get_graph_feature(x2.reshape(B, N, -1), k)
    x3 = edgeconv(nbrs, ctr, *params['conv3'])           # (M, 256)

    xmax, xavg = conv4_pool(x0.reshape(B, N, -1), x1.reshape(B, N, -1),
                            x2.reshape(B, N, -1), x3.reshape(B, N, -1),
                            *params['conv4'])            # (B, 1024) f32 each
    xg = jnp.concatenate([xmax, xavg], axis=-1)           # (B, 2048) f32

    return mlp_head(xg, params['ln1'], params['ln2'],
                    params['ln3'], params['ln4'])         # (B, 2) f32


if __name__ == "__main__":
    key = jax.random.PRNGKey(0)
    B, N, K = 2, 16, 5
    keys = jax.random.split(key, 16)

    params = {
        'conv0': make_edgeconv_params(keys[0], keys[1], 3, 64, c_out_pad=128),
        'conv1': make_edgeconv_params(keys[2], keys[3], 64, 64,
                                      c_in_pad=128, c_out_pad=128),
        'conv2': make_edgeconv_params(keys[4], keys[5], 64, 128, c_in_pad=128),
        'conv3': make_edgeconv_params(keys[6], keys[7], 128, 256),
        'conv4': make_conv4_params(keys[8], keys[9]),
        'ln1': conv_w(keys[10], 2048, 512).astype(jnp.bfloat16),
        'ln2': conv_w(keys[11], 512, 256).astype(jnp.bfloat16),
        'ln3': conv_w(keys[12], 256, 128).astype(jnp.bfloat16),
        'ln4': conv_w(keys[13], 128, 2).astype(jnp.bfloat16),
    }

    feat_xyz = jax.random.normal(keys[14], (B, N, 3), jnp.float32)

    out = dgcnn_forward(feat_xyz, params, k=K)
    out = jax.block_until_ready(out)
    assert out.shape == (B, 2) and out.dtype == jnp.float32
    print("KERNEL_OK")
</pallas_src>

<mosaic_0001>
module attributes {stable_mosaic.version = 11 : i64} {
  func.func @_knn_kernel(%arg0: i32, %arg1: i32, %arg2: memref<1x16x3xf32, #tpu.memory_space<vmem>>, %arg3: memref<1x16x3xf32, #tpu.memory_space<vmem>>, %arg4: memref<1x1x16xf32, #tpu.memory_space<vmem>>, %arg5: memref<1x16x5xi32, #tpu.memory_space<vmem>>) attributes {dimension_semantics = [#tpu.dimension_semantics<parallel>, #tpu.dimension_semantics<parallel>], iteration_bounds = array<i64: 2, 1>, scalar_prefetch = 0 : i64, scratch_operands = 0 : i64, tpu.core_type = #tpu.core_type<tc>, window_params = [{transform_indices = @transform_0, window_bounds = array<i64: 1, 16, 3>}, {transform_indices = @transform_1, window_bounds = array<i64: 1, 16, 3>}, {transform_indices = @transform_2, window_bounds = array<i64: 1, 1, 16>}, {transform_indices = @transform_3, window_bounds = array<i64: 1, 16, 5>}]} {
    %c0 = arith.constant 0 : index
    %c0_0 = arith.constant 0 : index
    %c0_1 = arith.constant 0 : index
    %0 = vector.load %arg2[%c0, %c0_0, %c0_1] : memref<1x16x3xf32, #tpu.memory_space<vmem>>, vector<1x16x3xf32>
    %1 = vector.shape_cast %0 : vector<1x16x3xf32> to vector<16x3xf32>
    %c0_2 = arith.constant 0 : index
    %c0_3 = arith.constant 0 : index
    %c0_4 = arith.constant 0 : index
    %2 = vector.load %arg3[%c0_2, %c0_3, %c0_4] : memref<1x16x3xf32, #tpu.memory_space<vmem>>, vector<1x16x3xf32>
    %3 = vector.shape_cast %2 : vector<1x16x3xf32> to vector<16x3xf32>
    %cst = arith.constant dense<0.000000e+00> : vector<16x16xf32>
    %4 = tpu.matmul %1, %3, %cst {dimension_numbers = #tpu.dot_dimension_numbers<[1], [1], [0], [0], [0, 0, 1, 0], [], []>} : vector<16x3xf32>, vector<16x3xf32>, vector<16x16xf32> -> vector<16x16xf32>
    %5 = arith.mulf %1, %1 : vector<16x3xf32>
    %cst_5 = arith.constant dense<0.000000e+00> : vector<16xf32>
    %6 = vector.multi_reduction <add>, %5, %cst_5 [1] : vector<16x3xf32> to vector<16xf32>
    %7 = vector.shape_cast %6 : vector<16xf32> to vector<16x1xf32>
    %cst_6 = arith.constant 2.000000e+00 : f32
    %8 = vector.broadcast %cst_6 : f32 to vector<16x16xf32>
    %9 = arith.mulf %8, %4 : vector<16x16xf32>
    %10 = vector.broadcast %7 : vector<16x1xf32> to vector<16x16xf32>
    %11 = arith.subf %9, %10 : vector<16x16xf32>
    %c0_7 = arith.constant 0 : index
    %c0_8 = arith.constant 0 : index
    %c0_9 = arith.constant 0 : index
    %12 = vector.load %arg4[%c0_7, %c0_8, %c0_9] : memref<1x1x16xf32, #tpu.memory_space<vmem>>, vector<1x1x16xf32>
    %13 = vector.shape_cast %12 : vector<1x1x16xf32> to vector<1x16xf32>
    %14 = vector.broadcast %13 : vector<1x16xf32> to vector<16x16xf32>
    %15 = arith.subf %11, %14 : vector<16x16xf32>
    %16 = tpu.iota {dimensions = array<i32: 1>} : vector<16x16xi32>
    %17 = arith.sitofp %16 : vector<16x16xi32> to vector<16x16xf32>
    %cst_10 = arith.constant dense<0xFF800000> : vector<16xf32>
    %18 = vector.multi_reduction <maximumf>, %15, %cst_10 [1] : vector<16x16xf32> to vector<16xf32>
    %19 = vector.shape_cast %18 : vector<16xf32> to vector<16x1xf32>
    %20 = vector.broadcast %19 : vector<16x1xf32> to vector<16x16xf32>
    %21 = arith.cmpf oge, %15, %20 : vector<16x16xf32>
    %cst_11 = arith.constant 1.600000e+01 : f32
    %22 = vector.broadcast %cst_11 : f32 to vector<16x16xf32>
    %23 = arith.select %21, %17, %22 : vector<16x16xi1>, vector<16x16xf32>
    %cst_12 = arith.constant dense<0x7F800000> : vector<16xf32>
    %24 = vector.multi_reduction <minimumf>, %23, %cst_12 [1] : vector<16x16xf32> to vector<16xf32>
    %25 = vector.shape_cast %24 : vector<16xf32> to vector<16x1xf32>
    %26 = vector.broadcast %25 : vector<16x1xf32> to vector<16x16xf32>
    %27 = arith.cmpf oeq, %17, %26 : vector<16x16xf32>
    %cst_13 = arith.constant 0xFF800000 : f32
    %28 = vector.broadcast %cst_13 : f32 to vector<16x16xf32>
    %29 = arith.select %27, %28, %15 : vector<16x16xi1>, vector<16x16xf32>
    %cst_14 = arith.constant dense<0xFF800000> : vector<16xf32>
    %30 = vector.multi_reduction <maximumf>, %29, %cst_14 [1] : vector<16x16xf32> to vector<16xf32>
    %31 = vector.shape_cast %30 : vector<16xf32> to vector<16x1xf32>
    %32 = vector.broadcast %31 : vector<16x1xf32> to vector<16x16xf32>
    %33 = arith.cmpf oge, %29, %32 : vector<16x16xf32>
    %cst_15 = arith.constant 1.600000e+01 : f32
    %34 = vector.broadcast %cst_15 : f32 to vector<16x16xf32>
    %35 = arith.select %33, %17, %34 : vector<16x16xi1>, vector<16x16xf32>
    %cst_16 = arith.constant dense<0x7F800000> : vector<16xf32>
    %36 = vector.multi_reduction <minimumf>, %35, %cst_16 [1] : vector<16x16xf32> to vector<16xf32>
    %37 = vector.shape_cast %36 : vector<16xf32> to vector<16x1xf32>
    %38 = vector.broadcast %37 : vector<16x1xf32> to vector<16x16xf32>
    %39 = arith.cmpf oeq, %17, %38 : vector<16x16xf32>
    %cst_17 = arith.constant 0xFF800000 : f32
    %40 = vector.broadcast %cst_17 : f32 to vector<16x16xf32>
    %41 = arith.select %39, %40, %29 : vector<16x16xi1>, vector<16x16xf32>
    %cst_18 = arith.constant dense<0xFF800000> : vector<16xf32>
    %42 = vector.multi_reduction <maximumf>, %41, %cst_18 [1] : vector<16x16xf32> to vector<16xf32>
    %43 = vector.shape_cast %42 : vector<16xf32> to vector<16x1xf32>
    %44 = vector.broadcast %43 : vector<16x1xf32> to vector<16x16xf32>
    %45 = arith.cmpf oge, %41, %44 : vector<16x16xf32>
    %cst_19 = arith.constant 1.600000e+01 : f32
    %46 = vector.broadcast %cst_19 : f32 to vector<16x16xf32>
    %47 = arith.select %45, %17, %46 : vector<16x16xi1>, vector<16x16xf32>
    %cst_20 = arith.constant dense<0x7F800000> : vector<16xf32>
    %48 = vector.multi_reduction <minimumf>, %47, %cst_20 [1] : vector<16x16xf32> to vector<16xf32>
    %49 = vector.shape_cast %48 : vector<16xf32> to vector<16x1xf32>
    %50 = vector.broadcast %49 : vector<16x1xf32> to vector<16x16xf32>
    %51 = arith.cmpf oeq, %17, %50 : vector<16x16xf32>
    %cst_21 = arith.constant 0xFF800000 : f32
    %52 = vector.broadcast %cst_21 : f32 to vector<16x16xf32>
    %53 = arith.select %51, %52, %41 : vector<16x16xi1>, vector<16x16xf32>
    %cst_22 = arith.constant dense<0xFF800000> : vector<16xf32>
    %54 = vector.multi_reduction <maximumf>, %53, %cst_22 [1] : vector<16x16xf32> to vector<16xf32>
    %55 = vector.shape_cast %54 : vector<16xf32> to vector<16x1xf32>
    %56 = vector.broadcast %55 : vector<16x1xf32> to vector<16x16xf32>
    %57 = arith.cmpf oge, %53, %56 : vector<16x16xf32>
    %cst_23 = arith.constant 1.600000e+01 : f32
    %58 = vector.broadcast %cst_23 : f32 to vector<16x16xf32>
    %59 = arith.select %57, %17, %58 : vector<16x16xi1>, vector<16x16xf32>
    %cst_24 = arith.constant dense<0x7F800000> : vector<16xf32>
    %60 = vector.multi_reduction <minimumf>, %59, %cst_24 [1] : vector<16x16xf32> to vector<16xf32>
    %61 = vector.shape_cast %60 : vector<16xf32> to vector<16x1xf32>
    %62 = vector.broadcast %61 : vector<16x1xf32> to vector<16x16xf32>
    %63 = arith.cmpf oeq, %17, %62 : vector<16x16xf32>
    %cst_25 = arith.constant 0xFF800000 : f32
    %64 = vector.broadcast %cst_25 : f32 to vector<16x16xf32>
    %65 = arith.select %63, %64, %53 : vector<16x16xi1>, vector<16x16xf32>
    %cst_26 = arith.constant dense<0xFF800000> : vector<16xf32>
    %66 = vector.multi_reduction <maximumf>, %65, %cst_26 [1] : vector<16x16xf32> to vector<16xf32>
    %67 = vector.shape_cast %66 : vector<16xf32> to vector<16x1xf32>
    %68 = vector.broadcast %67 : vector<16x1xf32> to vector<16x16xf32>
    %69 = arith.cmpf oge, %65, %68 : vector<16x16xf32>
    %cst_27 = arith.constant 1.600000e+01 : f32
    %70 = vector.broadcast %cst_27 : f32 to vector<16x16xf32>
    %71 = arith.select %69, %17, %70 : vector<16x16xi1>, vector<16x16xf32>
    %cst_28 = arith.constant dense<0x7F800000> : vector<16xf32>
    %72 = vector.multi_reduction <minimumf>, %71, %cst_28 [1] : vector<16x16xf32> to vector<16xf32>
    %73 = vector.shape_cast %72 : vector<16xf32> to vector<16x1xf32>
    %74 = tpu.concatenate %25, %37, %49, %61, %73 in 1 : vector<16x1xf32>, vector<16x1xf32>, vector<16x1xf32>, vector<16x1xf32>, vector<16x1xf32> -> vector<16x5xf32>
    %75 = arith.fptosi %74 : vector<16x5xf32> to vector<16x5xi32>
    %c0_29 = arith.constant 0 : index
    %c0_30 = arith.constant 0 : index
    %c0_31 = arith.constant 0 : index
    %76 = vector.load %arg5[%c0_29, %c0_30, %c0_31] : memref<1x16x5xi32, #tpu.memory_space<vmem>>, vector<1x16x5xi32>
    %77 = vector.shape_cast %76 : vector<1x16x5xi32> to vector<16x5xi32>
    %78 = vector.shape_cast %75 : vector<16x5xi32> to vector<1x16x5xi32>
    tpu.vector_store %arg5[%c0_29, %c0_30, %c0_31], %78 {strides = array<i32>} : memref<1x16x5xi32, #tpu.memory_space<vmem>>, vector<1x16x5xi32>,
    return
  }
  func.func @transform_0(%arg0: i32, %arg1: i32) -> (i32, i32, i32) {
    %c0_i32 = arith.constant 0 : i32
    %c0_i32_0 = arith.constant 0 : i32
    return %arg0, %arg1, %c0_i32 : i32, i32, i32
  }
  func.func @transform_1(%arg0: i32, %arg1: i32) -> (i32, i32, i32) {
    %c0_i32 = arith.constant 0 : i32
    %c0_i32_0 = arith.constant 0 : i32
    %c0_i32_1 = arith.constant 0 : i32
    return %arg0, %c0_i32, %c0_i32_0 : i32, i32, i32
  }
  func.func @transform_2(%arg0: i32, %arg1: i32) -> (i32, i32, i32) {
    %c0_i32 = arith.constant 0 : i32
    %c0_i32_0 = arith.constant 0 : i32
    %c0_i32_1 = arith.constant 0 : i32
    return %arg0, %c0_i32, %c0_i32_0 : i32, i32, i32
  }
  func.func @transform_3(%arg0: i32, %arg1: i32) -> (i32, i32, i32) {
    %c0_i32 = arith.constant 0 : i32
    %c0_i32_0 = arith.constant 0 : i32
    return %arg0, %arg1, %c0_i32 : i32, i32, i32
  }
}

</mosaic_0001>

<llo_original>
// kernel: tpu_custom_call.1
$region0: #{tpu_custom_call.1}
  #allocation0 [shape = 'u32[]', space=smem, size = 0x4, offset = 0x4, fixed_abs, tag = 'smem constant byte address 0x4 - core index']
  #allocation1 [shape = 'u32[144,128]{1,0:T(1,128)}', space=vmem, size = 0x12000, scoped, tag = 'internal scratch']
  %s0 = inlined_call_operand.vmem [shape: f32[2,16,3], index: 0, kind: input, shape index: {}]
  %s1 = inlined_call_operand.vmem [shape: f32[2,16,3], index: 1, kind: input, shape index: {}]
  %s2 = inlined_call_operand.vmem [shape: f32[2,1,16], index: 2, kind: input, shape index: {}]
  %s3 = inlined_call_operand.vmem [shape: s32[2,16,5], index: 3, kind: output, shape index: {}]
  %s4 = sld [smem:[#allocation0]]
  $region45: #{tpu_custom_call.1} parent=0
    _
  %s6 = ssub.s32 1, %s4
  %s7 = scalar_select 0, %s6, %s4
  loop: start=0, step=1, limit=4
  $region2: #{tpu_custom_call.1} parent=0 // loop_pre_header
    _
  $region3: #{tpu_custom_call.1} parent=0 // loop_header
    %s9 = sphi 0, %s13
    %p10 = scmp.ge.s32.totalorder %s9, 4
    %s16 = sphi 0, %s28
    %s17 = sphi 0, %s24
    %s18 = sphi 0, %s16
    %s19 = sphi 0, %s17
    %s20 = sphi 0, %s18
    %s21 = sphi 0, %s19
    %s33 = sphi 0, %s35
    %s36 = sphi 0, %s33
    %s37 = sphi 0, %s36
    %s53 = sphi 0, %s37
    %s59 = sphi 0, %s61
    %s62 = sphi 0, %s59
    %s63 = sphi 0, %s62
    %s79 = sphi 0, %s63
    %s85 = sphi 0, %s87
    %s88 = sphi 0, %s85
    %s89 = sphi 0, %s88
    %s105 = sphi 0, %s89
    %s113 = sphi 0, %s115
    %s116 = sphi 0, %s113
    %s117 = sphi 0, %s116
    %s133 = sphi 0, %s117
  $region4: #{tpu_custom_call.1} parent=0 // loop_header_branch
    %12 = sbr.rel (%p10) target = $region8
  $region5: #{tpu_custom_call.1} parent=0 // loop_body
    %s14 = ssub.s32 %s9, 1
    %s15 = ssub.s32 %s9, 2
    %s22 = sadd.s32 1, %s17
    %p23 = scmp.ge.s32.totalorder %s22, 1
    %s24 = scalar_select %p23, 0, %s22
    %s25 = sadd.s32 1, %s16
    %s26 = scalar_select %p23, %s25, %s16
    %p27 = scmp.ge.s32.totalorder %s26, 2
    %s28 = scalar_select %p27, 0, %s26
    %s29 = ssub.s32 %s16, %s28
    %s30 = ssub.s32 %s17, %s24
    %s31 = sor.u32 %s29, %s30
    %p32 = scmp.eq.s32.totalorder %s31, 0
    %s34 = sadd.s32 %s33, 1
    %s35 = scalar_select %p32, %s33, %s34
    %p38 = pneg %p32
    %p39 = scmp.eq.s32.totalorder %s9, 1
    %p40 = por %p38, %p39
    %p41 = scmp.ne.s32.totalorder %s33, %s36
    %p42 = scmp.eq.s32.totalorder %s9, 0
    %p43 = por %p41, %p42
    %p44 = scmp.ne.s32.totalorder %s33, %s36
    %p45 = scmp.eq.s32.totalorder %s14, 1
    %p46 = por %p44, %p45
    %p47 = scmp.ne.s32.totalorder %s36, %s37
    %p48 = scmp.eq.s32.totalorder %s14, 0
    %p49 = por %p47, %p48
    %p50 = scmp.ne.s32.totalorder %s36, %s37
    %p51 = scmp.eq.s32.totalorder %s15, 1
    %p52 = por %p50, %p51
    %p54 = scmp.ne.s32.totalorder %s37, %s53
    %p55 = scmp.eq.s32.totalorder %s15, 0
    %p56 = por %p54, %p55
    %s57 = ssub.s32 %s16, %s28
    %p58 = scmp.eq.s32.totalorder %s57, 0
    %s60 = sadd.s32 %s59, 1
    %s61 = scalar_select %p58, %s59, %s60
    %p64 = pneg %p58
    %p65 = scmp.eq.s32.totalorder %s9, 1
    %p66 = por %p64, %p65
    %p67 = scmp.ne.s32.totalorder %s59, %s62
    %p68 = scmp.eq.s32.totalorder %s9, 0
    %p69 = por %p67, %p68
    %p70 = scmp.ne.s32.totalorder %s59, %s62
    %p71 = scmp.eq.s32.totalorder %s14, 1
    %p72 = por %p70, %p71
    %p73 = scmp.ne.s32.totalorder %s62, %s63
    %p74 = scmp.eq.s32.totalorder %s14, 0
    %p75 = por %p73, %p74
    %p76 = scmp.ne.s32.totalorder %s62, %s63
    %p77 = scmp.eq.s32.totalorder %s15, 1
    %p78 = por %p76, %p77
    %p80 = scmp.ne.s32.totalorder %s63, %s79
    %p81 = scmp.eq.s32.totalorder %s15, 0
    %p82 = por %p80, %p81
    %s83 = ssub.s32 %s16, %s28
    %p84 = scmp.eq.s32.totalorder %s83, 0
    %s86 = sadd.s32 %s85, 1
    %s87 = scalar_select %p84, %s85, %s86
    %p90 = pneg %p84
    %p91 = scmp.eq.s32.totalorder %s9, 1
    %p92 = por %p90, %p91
    %p93 = scmp.ne.s32.totalorder %s85, %s88
    %p94 = scmp.eq.s32.totalorder %s9, 0
    %p95 = por %p93, %p94
    %p96 = scmp.ne.s32.totalorder %s85, %s88
    %p97 = scmp.eq.s32.totalorder %s14, 1
    %p98 = por %p96, %p97
    %p99 = scmp.ne.s32.totalorder %s88, %s89
    %p100 = scmp.eq.s32.totalorder %s14, 0
    %p101 = por %p99, %p100
    %p102 = scmp.ne.s32.totalorder %s88, %s89
    %p103 = scmp.eq.s32.totalorder %s15, 1
    %p104 = por %p102, %p103
    %p106 = scmp.ne.s32.totalorder %s89, %s105
    %p107 = scmp.eq.s32.totalorder %s15, 0
    %p108 = por %p106, %p107
    %s109 = ssub.s32 %s16, %s28
    %s110 = ssub.s32 %s17, %s24
    %s111 = sor.u32 %s109, %s110
    %p112 = scmp.eq.s32.totalorder %s111, 0
    %s114 = sadd.s32 %s113, 1
    %s115 = scalar_select %p112, %s113, %s114
    %p118 = pneg %p112
    %p119 = scmp.eq.s32.totalorder %s9, 1
    %p120 = por %p118, %p119
    %p121 = scmp.ne.s32.totalorder %s113, %s116
    %p122 = scmp.eq.s32.totalorder %s9, 0
    %p123 = por %p121, %p122
    %p124 = scmp.ne.s32.totalorder %s113, %s116
    %p125 = scmp.eq.s32.totalorder %s14, 1
    %p126 = por %p124, %p125
    %p127 = scmp.ne.s32.totalorder %s116, %s117
    %p128 = scmp.eq.s32.totalorder %s14, 0
    %p129 = por %p127, %p128
    %p130 = scmp.ne.s32.totalorder %s116, %s117
    %p131 = scmp.eq.s32.totalorder %s15, 1
    %p132 = por %p130, %p131
    %p134 = scmp.ne.s32.totalorder %s117, %s133
    %p135 = scmp.eq.s32.totalorder %s15, 0
    %p136 = por %p134, %p135
    %p137 = scmp.le.s32.totalorder 1, %s9
    %p138 = scmp.lt.s32.totalorder %s9, 3
    %p139 = pnand %p137, %p138
    %p140 = pneg %p139
    // Predicated region
    $region9: #{tpu_custom_call.1} parent=5 // pred_check
      _
    $region10: #{tpu_custom_call.1} parent=5 // pred_check_branch
      %142 = sbr.rel (%p139) target = $region12
    $region11: #{tpu_custom_call.1} parent=5 // pred_region
      %s143 = ssub.s32 %s9, 1
    $region12: #{tpu_custom_call.1} parent=5 // pred_fallthru
      _
    %p144 = scmp.lt.s32.totalorder %s9, 2
    // Predicated region
    $region13: #{tpu_custom_call.1} parent=5 // pred_check
      %p145 = pneg %p144
    $region14: #{tpu_custom_call.1} parent=5 // pred_check_branch
      %147 = sbr.rel (%p145) target = $region16
    $region15: #{tpu_custom_call.1} parent=5 // pred_region
      // Predicated region
      $region17: #{tpu_custom_call.1} parent=15 // pred_check
        %p148 = pneg %p43
      $region18: #{tpu_custom_call.1} parent=15 // pred_check_branch
        %150 = sbr.rel (%p148) target = $region20
      $region19: #{tpu_custom_call.1} parent=15 // pred_region
        %s151 = smul.u32 2, %s17
        %p152 = scmp.lt.s32.totalorder %s16, 1
        %s153 = scalar_select %p152, %s16, 1
        %p154 = scmp.lt.s32.totalorder %s151, 1
        %s155 = scalar_select %p154, %s151, 1
        %s156 = smul.addr %s153, 2
        %s157 = sadd.s32 %s155, %s156
        %s158 = smul.addr %s157, 8
        %s159 = scalar_lea.vmem %s0, %s158
        %s160 = smul.u32 2, %s17
      $region20: #{tpu_custom_call.1} parent=15 // pred_fallthru
        _
      // Predicated region
      $region21: #{tpu_custom_call.1} parent=15 // pred_check
        %p161 = pneg %p69
      $region22: #{tpu_custom_call.1} parent=15 // pred_check_branch
        %163 = sbr.rel (%p161) target = $region24
      $region23: #{tpu_custom_call.1} parent=15 // pred_region
        %p164 = scmp.lt.s32.totalorder %s16, 1
        %s165 = scalar_select %p164, %s16, 1
        %s166 = smul.addr %s165, 2
        %s167 = smul.addr %s166, 8
        %s168 = scalar_lea.vmem %s1, %s167
      $region24: #{tpu_custom_call.1} parent=15 // pred_fallthru
        _
      // Predicated region
      $region25: #{tpu_custom_call.1} parent=15 // pred_check
        %p169 = pneg %p95
      $region26: #{tpu_custom_call.1} parent=15 // pred_check_branch
        %171 = sbr.rel (%p169) target = $region28
      $region27: #{tpu_custom_call.1} parent=15 // pred_region
        %p172 = scmp.lt.s32.totalorder %s16, 1
        %s173 = scalar_select %p172, %s16, 1
        %s174 = scalar_lea.vmem %s2, %s173
      $region28: #{tpu_custom_call.1} parent=15 // pred_fallthru
        _
    $region16: #{tpu_custom_call.1} parent=5 // pred_fallthru
      _
    %p175 = scmp.le.s32.totalorder 1, %s9
    %p176 = scmp.lt.s32.totalorder %s9, 3
    %p177 = pnand %p175, %p176
    %p178 = pneg %p177
    // Predicated region
    $region29: #{tpu_custom_call.1} parent=5 // pred_check
      _
    $region30: #{tpu_custom_call.1} parent=5 // pred_check_branch
      %180 = sbr.rel (%p177) target = $region32
    $region31: #{tpu_custom_call.1} parent=5 // pred_region
      %s181 = ssub.s32 %s9, 1
      %s182 = smul.u32 2, %s19
      %p183 = scmp.lt.s32.totalorder %s18, 1
      %s184 = scalar_select %p183, %s18, 1
      %p185 = scmp.lt.s32.totalorder %s182, 1
      %s186 = scalar_select %p185, %s182, 1
      %s187 = smul.addr %s184, 2
      %s188 = sadd.s32 %s186, %s187
      %s189 = smul.addr %s188, 8
      %s190 = scalar_lea.vmem %s0, %s189
      %p191 = pneg %p49
      %p192 = pneg %p46
      %p193 = scmp.lt.s32.totalorder %s18, 1
      %s194 = scalar_select %p193, %s18, 1
      %s195 = smul.addr %s194, 2
      %s196 = smul.addr %s195, 8
      %s197 = scalar_lea.vmem %s1, %s196
      %p198 = pneg %p75
      %p199 = pneg %p72
      %p200 = scmp.lt.s32.totalorder %s18, 1
      %s201 = scalar_select %p200, %s18, 1
      %s202 = scalar_lea.vmem %s2, %s201
      %p203 = pneg %p101
      %p204 = pneg %p98
      %p205 = pneg %p129
      %p206 = pneg %p126
      %s207 = smul.u32 2, %s19
      %p208 = scmp.lt.s32.totalorder %s18, 1
      %s209 = scalar_select %p208, %s18, 1
      %p210 = scmp.lt.s32.totalorder %s207, 1
      %s211 = scalar_select %p210, %s207, 1
      %s212 = smul.addr %s209, 2
      %s213 = sadd.s32 %s211, %s212
      %s214 = smul.addr %s213, 8
      %s215 = scalar_lea.vmem %s3, %s214
      %s216 = smul.u32 2, %s19
      %p217 = scmp.lt.s32.totalorder %s18, 1
      %s218 = scalar_select %p217, %s18, 1
      %p219 = scmp.lt.s32.totalorder %s216, 1
      %s220 = scalar_select %p219, %s216, 1
      %s221 = smul.addr %s218, 2
      %s222 = sadd.s32 %s220, %s221
      %s223 = smul.addr %s222, 8
      %s224 = scalar_lea.vmem %s0, %s223
      %s225 = smul.u32 2, %s19
      %p226 = scmp.lt.s32.totalorder %s18, 1
      %s227 = scalar_select %p226, %s18, 1
      %s228 = smul.addr %s227, 2
      %s229 = smul.addr %s228, 8
      %s230 = scalar_lea.vmem %s1, %s229
      %p231 = scmp.lt.s32.totalorder %s18, 1
      %s232 = scalar_select %p231, %s18, 1
      %s233 = scalar_lea.vmem %s2, %s232
      %s234 = smul.u32 2, %s19
      %p235 = scmp.lt.s32.totalorder %s18, 1
      %s236 = scalar_select %p235, %s18, 1
      %p237 = scmp.lt.s32.totalorder %s234, 1
      %s238 = scalar_select %p237, %s234, 1
      %s239 = smul.addr %s236, 2
      %s240 = sadd.s32 %s238, %s239
      %s241 = smul.addr %s240, 8
      %s242 = scalar_lea.vmem %s3, %s241
      %s243 = smul.u32 2, %s19
      %v244 = vld [vmem:[%s224] sm:$0xff]
      %v245 = vld [vmem:[%s224 + $0x8] sm:$0xff]
      %v246 = vld [vmem:[%s230] sm:$0xff]
      %v247 = vld [vmem:[%s230 + $0x8] sm:$0xff]
      %vm248 = vcmask 23552
      %v250 = vsel %vm248, %v244, 0
      %v253 = vsel %vm248, %v245, 0
      %v256 = vsel %vm248, %v246, 0
      %v259 = vsel %vm248, %v247, 0
      %261 = vmatprep.subr.mxu0 0.0
      %262 = vmatpush1.xpose.msra.mxu0 %v256
      %263 = vmatprep.subr.mxu0 0.0
      %264 = vmatpush1.xpose.msra.mxu0 %v259
      %265 = vmatprep.subr.mxu0 0.0
      %266 = vmatpush1.xpose.msra.mxu0 0.0
      %267 = vmatprep.subr.mxu0 0.0
      %268 = vmatpush1.xpose.msra.mxu0 0.0
      %269 = vmatprep.subr.mxu0 0.0
      %270 = vmatpush1.xpose.msra.mxu0 0.0
      %271 = vmatprep.subr.mxu0 0.0
      %272 = vmatpush1.xpose.msra.mxu0 0.0
      %273 = vmatprep.subr.mxu0 0.0
      %274 = vmatpush1.xpose.msra.mxu0 0.0
      %275 = vmatprep.subr.mxu0 0.0
      %276 = vmatpush1.xpose.msra.mxu0 0.0
      %277 = vmatprep.subr.mxu0 0.0
      %278 = vmatpush1.xpose.msra.mxu0 0.0
      %279 = vmatprep.subr.mxu0 0.0
      %280 = vmatpush1.xpose.msra.mxu0 0.0
      %281 = vmatprep.subr.mxu0 0.0
      %282 = vmatpush1.xpose.msra.mxu0 0.0
      %283 = vmatprep.subr.mxu0 0.0
      %284 = vmatpush1.xpose.msra.mxu0 0.0
      %285 = vmatprep.subr.mxu0 0.0
      %286 = vmatpush1.xpose.msra.mxu0 0.0
      %287 = vmatprep.subr.mxu0 0.0
      %288 = vmatpush1.xpose.msra.mxu0 0.0
      %289 = vmatprep.subr.mxu0 0.0
      %290 = vmatpush1.xpose.msra.mxu0 0.0
      %291 = vmatprep.subr.mxu0 0.0
      %292 = vmatpush1.xpose.msra.mxu0 0.0
      %293 = vmatprep.subr.mxu0 0.0
      %294 = vmatpush1.xpose.msra.mxu0 0.0
      %295 = vmatprep.subr.mxu0 0.0
      %296 = vmatpush1.xpose.msra.mxu0 0.0
      %297 = vmatprep.subr.mxu0 0.0
      %298 = vmatpush1.xpose.msra.mxu0 0.0
      %299 = vmatprep.subr.mxu0 0.0
      %300 = vmatpush1.xpose.msra.mxu0 0.0
      %301 = vmatprep.subr.mxu0 0.0
      %302 = vmatpush1.xpose.msra.mxu0 0.0
      %303 = vmatprep.subr.mxu0 0.0
      %304 = vmatpush1.xpose.msra.mxu0 0.0
      %305 = vmatprep.subr.mxu0 0.0
      %306 = vmatpush1.xpose.msra.mxu0 0.0
      %307 = vmatprep.subr.mxu0 0.0
      %308 = vmatpush1.xpose.msra.mxu0 0.0
      %309 = vmatprep.subr.mxu0 0.0
      %310 = vmatpush1.xpose.msra.mxu0 0.0
      %311 = vmatprep.subr.mxu0 0.0
      %312 = vmatpush1.xpose.msra.mxu0 0.0
      %313 = vmatprep.subr.mxu0 0.0
      %314 = vmatpush1.xpose.msra.mxu0 0.0
      %315 = vmatprep.subr.mxu0 0.0
      %316 = vmatpush1.xpose.msra.mxu0 0.0
      %317 = vmatprep.subr.mxu0 0.0
      %318 = vmatpush1.xpose.msra.mxu0 0.0
      %319 = vmatprep.subr.mxu0 0.0
      %320 = vmatpush1.xpose.msra.mxu0 0.0
      %321 = vmatprep.subr.mxu0 0.0
      %322 = vmatpush1.xpose.msra.mxu0 0.0
      %323 = vmatprep.subr.mxu0 0.0
      %324 = vmatpush1.xpose.msra.mxu0 0.0
      %325 = vmatprep.mubr.f32.mxu0 0.0
      %326 = vmatmul.mubr.f32.gmra.mrb[0].mxu0 %v250
      %v327 = vpop.f32.mrb[0].mxu0
      %v328 = vadd.f32 0.0, %v327
      %v329 = vpop.f32.mrb[0].mxu0
      %330 = vmatprep.mubr.f32.mxu0 0.0
      %331 = vmatmul.mubr.f32.gmra.mrb[0].mxu0 %v253
      %v332 = vpop.f32.mrb[0].mxu0
      %v333 = vadd.f32 0.0, %v332
      %v334 = vpop.f32.mrb[0].mxu0
      %335 = vdwg.mxu0
      %v336 = vmul.f32 %v244, %v244
      %v337 = vmul.f32 %v245, %v245
      %v338 = vsel %vm248, %v336, 0.0
      %339 = vadd.xlane.f32.xlu0 %v338
      %v340 = vpop.xlane.xlu0 %339
      %v341 = vsel %vm248, %v337, 0.0
      %342 = vadd.xlane.f32.xlu0 %v341
      %v343 = vpop.xlane.xlu0 %342
      %v344 = vmul.f32 %v328, 2.0
      %v345 = vmul.f32 %v333, 2.0
      %v346 = vsub.f32 %v344, %v340
      %v347 = vsub.f32 %v345, %v343
      %v348 = vld [vmem:[%s233] sm:$0x1]
      %v350 = vlaneseq
      %v351 = vshrl.u32 %v350, 7
      %v352 = vsub.s32 0, %v351
      %v353 = vrot.slane %v348, %v352
      %v355 = vsub.f32 %v346, %v353
      %v356 = vsub.f32 %v347, %v353
      %v357 = vlaneseq
      %v358 = vand.u32 %v357, 127
      %v359 = vcvt.s32.f32 %v358
      %vm360 = vcmask 130048
      %v361 = vsel %vm360, %v355, -inf
      %362 = vmax.xlane.f32.xlu0 %v361
      %v363 = vpop.xlane.xlu0 %362
      %v364 = vsel %vm360, %v356, -inf
      %365 = vmax.xlane.f32.xlu0 %v364
      %v366 = vpop.xlane.xlu0 %365
      %vm367 = vcmp.ge.f32.partialorder %v355, %v363
      %vm368 = vcmp.ge.f32.partialorder %v356, %v366
      %v369 = vsel %vm367, %v359, 16.0
      %v370 = vsel %vm368, %v359, 16.0
      %v371 = vsel %vm360, %v369, inf
      %372 = vmin.xlane.f32.xlu0 %v371
      %v373 = vpop.xlane.xlu0 %372
      %v374 = vsel %vm360, %v370, inf
      %375 = vmin.xlane.f32.xlu0 %v374
      %v376 = vpop.xlane.xlu0 %375
      %vm377 = vcmp.eq.f32.partialorder %v359, %v373
      %vm378 = vcmp.eq.f32.partialorder %v359, %v376
      %v379 = vsel %vm377, -inf, %v355
      %v380 = vsel %vm378, -inf, %v356
      %v381 = vsel %vm360, %v379, -inf
      %382 = vmax.xlane.f32.xlu0 %v381
      %v383 = vpop.xlane.xlu0 %382
      %v384 = vsel %vm360, %v380, -inf
      %385 = vmax.xlane.f32.xlu0 %v384
      %v386 = vpop.xlane.xlu0 %385
      %vm387 = vcmp.ge.f32.partialorder %v379, %v383
      %vm388 = vcmp.ge.f32.partialorder %v380, %v386
      %v389 = vsel %vm387, %v359, 16.0
      %v390 = vsel %vm388, %v359, 16.0
      %v391 = vsel %vm360, %v389, inf
      %392 = vmin.xlane.f32.xlu0 %v391
      %v393 = vpop.xlane.xlu0 %392
      %v394 = vsel %vm360, %v390, inf
      %395 = vmin.xlane.f32.xlu0 %v394
      %v396 = vpop.xlane.xlu0 %395
      %vm397 = vcmp.eq.f32.partialorder %v359, %v393
      %vm398 = vcmp.eq.f32.partialorder %v359, %v396
      %v399 = vsel %vm397, -inf, %v379
      %v400 = vsel %vm398, -inf, %v380
      %v401 = vsel %vm360, %v399, -inf
      %402 = vmax.xlane.f32.xlu0 %v401
      %v403 = vpop.xlane.xlu0 %402
      %v404 = vsel %vm360, %v400, -inf
      %405 = vmax.xlane.f32.xlu0 %v404
      %v406 = vpop.xlane.xlu0 %405
      %vm407 = vcmp.ge.f32.partialorder %v399, %v403
      %vm408 = vcmp.ge.f32.partialorder %v400, %v406
      %v409 = vsel %vm407, %v359, 16.0
      %v410 = vsel %vm408, %v359, 16.0
      %v411 = vsel %vm360, %v409, inf
      %412 = vmin.xlane.f32.xlu0 %v411
      %v413 = vpop.xlane.xlu0 %412
      %v414 = vsel %vm360, %v410, inf
      %415 = vmin.xlane.f32.xlu0 %v414
      %v416 = vpop.xlane.xlu0 %415
      %vm417 = vcmp.eq.f32.partialorder %v359, %v413
      %vm418 = vcmp.eq.f32.partialorder %v359, %v416
      %v419 = vsel %vm417, -inf, %v399
      %v420 = vsel %vm418, -inf, %v400
      %v421 = vsel %vm360, %v419, -inf
      %422 = vmax.xlane.f32.xlu0 %v421
      %v423 = vpop.xlane.xlu0 %422
      %v424 = vsel %vm360, %v420, -inf
      %425 = vmax.xlane.f32.xlu0 %v424
      %v426 = vpop.xlane.xlu0 %425
      %vm427 = vcmp.ge.f32.partialorder %v419, %v423
      %vm428 = vcmp.ge.f32.partialorder %v420, %v426
      %v429 = vsel %vm427, %v359, 16.0
      %v430 = vsel %vm428, %v359, 16.0
      %v431 = vsel %vm360, %v429, inf
      %432 = vmin.xlane.f32.xlu0 %v431
      %v433 = vpop.xlane.xlu0 %432
      %v434 = vsel %vm360, %v430, inf
      %435 = vmin.xlane.f32.xlu0 %v434
      %v436 = vpop.xlane.xlu0 %435
      %vm437 = vcmp.eq.f32.partialorder %v359, %v433
      %vm438 = vcmp.eq.f32.partialorder %v359, %v436
      %v439 = vsel %vm437, -inf, %v419
      %v440 = vsel %vm438, -inf, %v420
      %v441 = vsel %vm360, %v439, -inf
      %442 = vmax.xlane.f32.xlu0 %v441
      %v443 = vpop.xlane.xlu0 %442
      %v444 = vsel %vm360, %v440, -inf
      %445 = vmax.xlane.f32.xlu0 %v444
      %v446 = vpop.xlane.xlu0 %445
      %vm447 = vcmp.ge.f32.partialorder %v439, %v443
      %vm448 = vcmp.ge.f32.partialorder %v440, %v446
      %v449 = vsel %vm447, %v359, 16.0
      %v450 = vsel %vm448, %v359, 16.0
      %v451 = vsel %vm360, %v449, inf
      %452 = vmin.xlane.f32.xlu0 %v451
      %v453 = vpop.xlane.xlu0 %452
      %v454 = vsel %vm360, %v450, inf
      %455 = vmin.xlane.f32.xlu0 %v454
      %v456 = vpop.xlane.xlu0 %455
      %vm457 = vcmask 7168
      %v458 = vsel %vm457, %v373, %v393
      %v459 = vsel %vm457, %v376, %v396
      %vm460 = vcmask 15360
      %v461 = vsel %vm460, %v458, %v413
      %v462 = vsel %vm460, %v459, %v416
      %v463 = vsel %vm248, %v461, %v433
      %v464 = vsel %vm248, %v462, %v436
      %vm465 = vcmask 31744
      %v466 = vsel %vm465, %v463, %v453
      %v467 = vsel %vm465, %v464, %v456
      %v468 = vcvt.f32.s32.to.zero.pseudo %v466
      %v469 = vcvt.f32.s32.to.zero.pseudo %v467
      %vm470 = vcmask 39936
      %471 = vst.msk [vmem:[%s242] sm:$0xff] %vm470, %v468
      %472 = vst.msk [vmem:[%s242 + $0x8] sm:$0xff] %vm470, %v469
      %s473 = smul.u32 2, %s19
      %p474 = scmp.lt.s32.totalorder %s18, 1
      %s475 = scalar_select %p474, %s18, 1
      %p476 = scmp.lt.s32.totalorder %s473, 1
      %s477 = scalar_select %p476, %s473, 1
      %s478 = smul.addr %s475, 2
      %s479 = sadd.s32 %s477, %s478
      %s480 = smul.addr %s479, 8
      %s481 = scalar_lea.vmem %s3, %s480
      // Predicated region
      $region33: #{tpu_custom_call.1} parent=31 // pred_check
        %p482 = pneg %p126
      $region34: #{tpu_custom_call.1} parent=31 // pred_check_branch
        %484 = sbr.rel (%p482) target = $region36
      $region35: #{tpu_custom_call.1} parent=31 // pred_region
        %s485 = smul.u32 2, %s19
      $region36: #{tpu_custom_call.1} parent=31 // pred_fallthru
        _
    $region32: #{tpu_custom_call.1} parent=5 // pred_fallthru
      _
    %p486 = scmp.le.s32.totalorder 2, %s9
    // Predicated region
    $region37: #{tpu_custom_call.1} parent=5 // pred_check
      %p487 = pneg %p486
    $region38: #{tpu_custom_call.1} parent=5 // pred_check_branch
      %489 = sbr.rel (%p487) target = $region40
    $region39: #{tpu_custom_call.1} parent=5 // pred_region
      %s490 = ssub.s32 %s9, 2
      // Predicated region
      $region41: #{tpu_custom_call.1} parent=39 // pred_check
        %p491 = pneg %p132
      $region42: #{tpu_custom_call.1} parent=39 // pred_check_branch
        %493 = sbr.rel (%p491) target = $region44
      $region43: #{tpu_custom_call.1} parent=39 // pred_region
        %s494 = smul.u32 2, %s21
        %p495 = scmp.lt.s32.totalorder %s20, 1
        %s496 = scalar_select %p495, %s20, 1
        %p497 = scmp.lt.s32.totalorder %s494, 1
        %s498 = scalar_select %p497, %s494, 1
        %s499 = smul.addr %s496, 2
        %s500 = sadd.s32 %s498, %s499
        %s501 = smul.addr %s500, 8
        %s502 = scalar_lea.vmem %s3, %s501
      $region44: #{tpu_custom_call.1} parent=39 // pred_fallthru
        _
    $region40: #{tpu_custom_call.1} parent=5 // pred_fallthru
      _
  $region6: #{tpu_custom_call.1} parent=0 // loop_footer
    %s13 = sadd.s32 1, %s9
  $region7: #{tpu_custom_call.1} parent=0 // loop_footer_branch
    %8 = sbr.rel target = $region3
  $region8: #{tpu_custom_call.1} parent=0 // loop_exit
    _

</llo_original>
